<compile_context>
chip_gen: v6e
topology: v6e:2x2x1
jax: 0.10.0
libtpu: 0.0.40
codegen_flags: <defaults>
</compile_context>

<pallas_src>
import functools

import jax
import jax.numpy as jnp
from jax.experimental import pallas as pl
from jax.experimental.pallas import tpu as pltpu

LOG_SIG_MAX = 2.0
LOG_SIG_MIN = -20.0


def _round_up(x, m):
    return ((x + m - 1) // m) * m


def _const_block_spec(shape):
    """Whole-array block with a constant index_map.  The block never changes
    across grid steps, so request a single buffer (halves its VMEM residency
    vs. the default double-buffering)."""
    index_map = lambda i: (0,) * len(shape)
    try:
        return pl.BlockSpec(shape, index_map, pipeline_mode=pl.Buffered(1))
    except TypeError:  # older jax without pipeline_mode on BlockSpec
        return pl.BlockSpec(shape, index_map)


def _policy_kernel(num_hidden, *refs):
    # refs layout (batch on the lane axis):
    #   x_ref                         (num_inputs, TB)  f32
    #   (w_ref, b_ref) * num_hidden   (H, in) bf16, (H, 1) f32
    #   w_head_ref, b_head_ref        (2A, H) bf16, (2A, 1) f32   fused [mean; log_std]
    #   lo_ref, hi_ref                (2A, 1) f32 per-row clamp bounds
    #   out_ref                       (2A, TB) f32 packed [mean; log_std]
    x_ref = refs[0]
    hidden_refs = refs[1:1 + 2 * num_hidden]
    w_head_ref = refs[1 + 2 * num_hidden]
    b_head_ref = refs[2 + 2 * num_hidden]
    lo_ref = refs[3 + 2 * num_hidden]
    hi_ref = refs[4 + 2 * num_hidden]
    out_ref = refs[-1]

    # Batch-in-lanes MLP: y = relu(W @ x + b).  Matmuls in bf16 on the MXU
    # with f32 accumulation; bias add / ReLU stay f32.
    x = x_ref[...].astype(jnp.bfloat16)
    for li in range(num_hidden):
        w = hidden_refs[2 * li][...]                     # (H, in)  bf16
        b = hidden_refs[2 * li + 1][...]                 # (H, 1)   f32, lane-broadcast
        y = jnp.dot(w, x, preferred_element_type=jnp.float32) + b
        x = jnp.maximum(y, 0.0).astype(jnp.bfloat16)     # (H, TB)

    # Fused [mean; log_std] head: one MXU push, lane-dense (2A, TB) result.
    packed = jnp.dot(w_head_ref[...], x,
                     preferred_element_type=jnp.float32) + b_head_ref[...]

    # Row-wise clamp: mean rows get (-inf, +inf) (no-op), log_std rows get
    # (LOG_SIG_MIN, LOG_SIG_MAX).  Pure elementwise min/max, no selects.
    out_ref[...] = jnp.clip(packed, lo_ref[...], hi_ref[...]).astype(out_ref.dtype)


def xavier_uniform(key, shape, dtype=jnp.float32):
    # torch.nn.init.xavier_uniform_ with gain=1 on a (out, in) weight.
    fan_out, fan_in = shape
    bound = (6.0 / (fan_in + fan_out)) ** 0.5
    return jax.random.uniform(key, shape, dtype, minval=-bound, maxval=bound)


def init_gaussian_policy_params(key, num_inputs, num_actions, hidden_dims):
    params = []
    in_dim = num_inputs
    for h in hidden_dims:
        key, sub = jax.random.split(key)
        w = xavier_uniform(sub, (h, in_dim))        # torch Linear stores (out, in)
        b = jnp.zeros((h,), jnp.float32)
        params.append((w, b))
        in_dim = h
    key, km, ks = jax.random.split(key, 3)
    wm = xavier_uniform(km, (num_actions, in_dim))
    bm = jnp.zeros((num_actions,), jnp.float32)
    ws = xavier_uniform(ks, (num_actions, in_dim))
    bs = jnp.zeros((num_actions,), jnp.float32)
    return params, (wm, bm), (ws, bs)


def prepare_flat_args(hidden_params, mean_head, logstd_head):
    """Weights kept in native torch (out, in) layout but cast to bf16 (the
    batch-in-lanes kernel computes W @ x), biases as (out, 1) f32, plus the
    fused [mean; log_std] head and per-row clamp-bound vectors."""
    flat = []
    for w, b in hidden_params:
        flat.append(jnp.asarray(w, jnp.bfloat16))
        flat.append(jnp.asarray(b, jnp.float32).reshape(-1, 1))
    wm, bm = mean_head
    ws, bs = logstd_head
    w_head = jnp.concatenate([jnp.asarray(wm, jnp.bfloat16),
                              jnp.asarray(ws, jnp.bfloat16)], axis=0)    # (2A, H)
    b_head = jnp.concatenate([jnp.asarray(bm, jnp.float32),
                              jnp.asarray(bs, jnp.float32)]).reshape(-1, 1)
    A = wm.shape[0]
    lo = jnp.concatenate([jnp.full((A, 1), -jnp.inf, jnp.float32),
                          jnp.full((A, 1), LOG_SIG_MIN, jnp.float32)], axis=0)
    hi = jnp.concatenate([jnp.full((A, 1), jnp.inf, jnp.float32),
                          jnp.full((A, 1), LOG_SIG_MAX, jnp.float32)], axis=0)
    flat += [w_head, b_head, lo, hi]
    return tuple(flat)


@functools.partial(jax.jit,
                   static_argnames=("num_hidden", "num_actions", "batch_tile"))
def _policy_forward_t(state_t, flat_args, num_hidden, num_actions, batch_tile):
    num_inputs, B = state_t.shape
    two_a = 2 * num_actions
    grid = (pl.cdiv(B, batch_tile),)

    kernel = functools.partial(_policy_kernel, num_hidden)

    # Batch tiles stream over the lane axis; params stay VMEM resident.
    in_specs = [pl.BlockSpec((num_inputs, batch_tile), lambda i: (0, i))]
    for a in flat_args:
        in_specs.append(_const_block_spec(a.shape))
    out_spec = pl.BlockSpec((two_a, batch_tile), lambda i: (0, i))

    # Advisory cost estimate for XLA's scheduler.
    flops = 0
    in_dim = num_inputs
    for li in range(num_hidden):
        h = flat_args[2 * li].shape[0]
        flops += 2 * B * h * in_dim
        in_dim = h
    flops += 2 * B * two_a * in_dim
    weight_bytes = sum(int(a.size) * a.dtype.itemsize for a in flat_args)
    bytes_accessed = int(state_t.size) * 4 + B * two_a * 4 + weight_bytes

    # VMEM budget: double-buffered state/out tiles + single-buffered params
    # + activation headroom.
    widths = ([num_inputs]
              + [flat_args[2 * i].shape[0] for i in range(num_hidden)]
              + [two_a])
    act_bytes = max(widths) * batch_tile * 4
    est = (2 * num_inputs * batch_tile * 4 + 2 * two_a * batch_tile * 4
           + weight_bytes + 6 * act_bytes)
    vmem_limit = int(min(48 * 2 ** 20, max(32 * 2 ** 20, 2 * est)))

    return pl.pallas_call(
        kernel,
        out_shape=jax.ShapeDtypeStruct((two_a, B), jnp.float32),
        grid=grid,
        in_specs=in_specs,
        out_specs=out_spec,
        compiler_params=pltpu.CompilerParams(
            dimension_semantics=("parallel",),
            vmem_limit_bytes=vmem_limit),
        cost_estimate=pl.CostEstimate(flops=flops, transcendentals=0,
                                      bytes_accessed=bytes_accessed),
    )(state_t, *flat_args)


def gaussian_policy_forward(state, flat_args, num_hidden):
    """Returns (mean, log_std), matching GaussianPolicy.forward."""
    state = jnp.asarray(state, jnp.float32)
    B = state.shape[0]
    num_actions = flat_args[-4].shape[0] // 2            # fused head weight (2A, H)
    if B == 0:
        z = jnp.zeros((0, num_actions), jnp.float32)
        return z, z

    # Batch tile on the lane axis.  Tiny batches -> single full block (block
    # shape == array shape, so no 128-lane divisibility constraint).  Larger
    # batches -> 128-multiple tiles sized so the grid has >= 2 steps (v7x
    # megacore) capped at 1024 lanes; the partial final block is masked by
    # Pallas, so no wrapper-side padding pass is needed.
    if B < 256:
        TB = B
    else:
        TB = min(1024, _round_up(pl.cdiv(B, 2), 128))

    state_t = state.T                                    # (num_inputs, B): batch -> lanes
    packed = _policy_forward_t(state_t, flat_args, num_hidden, num_actions, TB)
    mean = packed[:num_actions, :].T
    log_std = packed[num_actions:, :].T
    return mean, log_std


if __name__ == "__main__":
    # Small shapes consistent with the module's forward.
    batch = 2
    num_inputs = 16
    num_actions = 8
    hidden_dims = (32, 32)

    key = jax.random.PRNGKey(0)
    key, kparams, kstate = jax.random.split(key, 3)

    hidden_params, mean_head, logstd_head = init_gaussian_policy_params(
        kparams, num_inputs, num_actions, hidden_dims)
    flat_args = prepare_flat_args(hidden_params, mean_head, logstd_head)

    state = jax.random.normal(kstate, (batch, num_inputs), jnp.float32)

    mean, log_std = gaussian_policy_forward(state, flat_args,
                                            num_hidden=len(hidden_dims))
    jax.block_until_ready((mean, log_std))

    # Reference check in plain f32 JAX (same math as the PyTorch module).
    # bf16 matmuls in the kernel loosen parity from 1e-5 to ~1e-2.
    x = state
    for w, b in hidden_params:
        x = jnp.maximum(x @ w.T + b, 0.0)
    ref_mean = x @ mean_head[0].T + mean_head[1]
    ref_log_std = jnp.clip(x @ logstd_head[0].T + logstd_head[1],
                           LOG_SIG_MIN, LOG_SIG_MAX)

    assert mean.shape == (batch, num_actions)
    assert log_std.shape == (batch, num_actions)
    assert bool(jnp.all(jnp.isfinite(mean)))
    assert bool(jnp.all(log_std <= LOG_SIG_MAX)) and bool(jnp.all(log_std >= LOG_SIG_MIN))
    assert jnp.allclose(mean, ref_mean, atol=3e-2, rtol=3e-2)
    assert jnp.allclose(log_std, ref_log_std, atol=3e-2, rtol=3e-2)

    # TODO(synk): sample() (Normal.rsample + tanh squash + log_prob) is not
    # kernelized; only the deterministic forward() hot path is.
    print("KERNEL_OK")
</pallas_src>

<mosaic_0001>
module attributes {stable_mosaic.version = 11 : i64} {
  func.func @_policy_kernel(%arg0: i32, %arg1: memref<16x2xf32, #tpu.memory_space<vmem>>, %arg2: memref<32x16xbf16, #tpu.memory_space<vmem>>, %arg3: memref<32x1xf32, #tpu.memory_space<vmem>>, %arg4: memref<32x32xbf16, #tpu.memory_space<vmem>>, %arg5: memref<32x1xf32, #tpu.memory_space<vmem>>, %arg6: memref<16x32xbf16, #tpu.memory_space<vmem>>, %arg7: memref<16x1xf32, #tpu.memory_space<vmem>>, %arg8: memref<16x1xf32, #tpu.memory_space<vmem>>, %arg9: memref<16x1xf32, #tpu.memory_space<vmem>>, %arg10: memref<16x2xf32, #tpu.memory_space<vmem>>) attributes {dimension_semantics = [#tpu.dimension_semantics<parallel>], iteration_bounds = array<i64: 1>, scalar_prefetch = 0 : i64, scratch_operands = 0 : i64, tpu.core_type = #tpu.core_type<tc>, window_params = [{transform_indices = @transform_0, window_bounds = array<i64: 16, 2>}, {pipeline_mode = #tpu.pipeline_mode<synchronous>, transform_indices = @transform_1, window_bounds = array<i64: 32, 16>}, {pipeline_mode = #tpu.pipeline_mode<synchronous>, transform_indices = @transform_2, window_bounds = array<i64: 32, 1>}, {pipeline_mode = #tpu.pipeline_mode<synchronous>, transform_indices = @transform_3, window_bounds = array<i64: 32, 32>}, {pipeline_mode = #tpu.pipeline_mode<synchronous>, transform_indices = @transform_4, window_bounds = array<i64: 32, 1>}, {pipeline_mode = #tpu.pipeline_mode<synchronous>, transform_indices = @transform_5, window_bounds = array<i64: 16, 32>}, {pipeline_mode = #tpu.pipeline_mode<synchronous>, transform_indices = @transform_6, window_bounds = array<i64: 16, 1>}, {pipeline_mode = #tpu.pipeline_mode<synchronous>, transform_indices = @transform_7, window_bounds = array<i64: 16, 1>}, {pipeline_mode = #tpu.pipeline_mode<synchronous>, transform_indices = @transform_8, window_bounds = array<i64: 16, 1>}, {transform_indices = @transform_9, window_bounds = array<i64: 16, 2>}]} {
    %c0 = arith.constant 0 : index
    %c0_0 = arith.constant 0 : index
    %0 = vector.load %arg1[%c0, %c0_0] : memref<16x2xf32, #tpu.memory_space<vmem>>, vector<16x2xf32>
    %1 = arith.truncf %0 : vector<16x2xf32> to vector<16x2xbf16>
    %c0_1 = arith.constant 0 : index
    %c0_2 = arith.constant 0 : index
    %2 = vector.load %arg2[%c0_1, %c0_2] : memref<32x16xbf16, #tpu.memory_space<vmem>>, vector<32x16xbf16>
    %c0_3 = arith.constant 0 : index
    %c0_4 = arith.constant 0 : index
    %3 = vector.load %arg3[%c0_3, %c0_4] : memref<32x1xf32, #tpu.memory_space<vmem>>, vector<32x1xf32>
    %cst = arith.constant dense<0.000000e+00> : vector<32x2xf32>
    %4 = tpu.matmul %2, %1, %cst {dimension_numbers = #tpu.dot_dimension_numbers<[1], [0], [0], [1], [0, 0, 1, 1], [], []>} : vector<32x16xbf16>, vector<16x2xbf16>, vector<32x2xf32> -> vector<32x2xf32>
    %5 = vector.broadcast %3 : vector<32x1xf32> to vector<32x2xf32>
    %6 = arith.addf %4, %5 : vector<32x2xf32>
    %cst_5 = arith.constant 0.000000e+00 : f32
    %7 = vector.broadcast %cst_5 : f32 to vector<32x2xf32>
    %8 = arith.maximumf %6, %7 : vector<32x2xf32>
    %9 = arith.truncf %8 : vector<32x2xf32> to vector<32x2xbf16>
    %c0_6 = arith.constant 0 : index
    %c0_7 = arith.constant 0 : index
    %10 = vector.load %arg4[%c0_6, %c0_7] : memref<32x32xbf16, #tpu.memory_space<vmem>>, vector<32x32xbf16>
    %c0_8 = arith.constant 0 : index
    %c0_9 = arith.constant 0 : index
    %11 = vector.load %arg5[%c0_8, %c0_9] : memref<32x1xf32, #tpu.memory_space<vmem>>, vector<32x1xf32>
    %cst_10 = arith.constant dense<0.000000e+00> : vector<32x2xf32>
    %12 = tpu.matmul %10, %9, %cst_10 {dimension_numbers = #tpu.dot_dimension_numbers<[1], [0], [0], [1], [0, 0, 1, 1], [], []>} : vector<32x32xbf16>, vector<32x2xbf16>, vector<32x2xf32> -> vector<32x2xf32>
    %13 = vector.broadcast %11 : vector<32x1xf32> to vector<32x2xf32>
    %14 = arith.addf %12, %13 : vector<32x2xf32>
    %cst_11 = arith.constant 0.000000e+00 : f32
    %15 = vector.broadcast %cst_11 : f32 to vector<32x2xf32>
    %16 = arith.maximumf %14, %15 : vector<32x2xf32>
    %17 = arith.truncf %16 : vector<32x2xf32> to vector<32x2xbf16>
    %c0_12 = arith.constant 0 : index
    %c0_13 = arith.constant 0 : index
    %18 = vector.load %arg6[%c0_12, %c0_13] : memref<16x32xbf16, #tpu.memory_space<vmem>>, vector<16x32xbf16>
    %cst_14 = arith.constant dense<0.000000e+00> : vector<16x2xf32>
    %19 = tpu.matmul %18, %17, %cst_14 {dimension_numbers = #tpu.dot_dimension_numbers<[1], [0], [0], [1], [0, 0, 1, 1], [], []>} : vector<16x32xbf16>, vector<32x2xbf16>, vector<16x2xf32> -> vector<16x2xf32>
    %c0_15 = arith.constant 0 : index
    %c0_16 = arith.constant 0 : index
    %20 = vector.load %arg7[%c0_15, %c0_16] : memref<16x1xf32, #tpu.memory_space<vmem>>, vector<16x1xf32>
    %21 = vector.broadcast %20 : vector<16x1xf32> to vector<16x2xf32>
    %22 = arith.addf %19, %21 : vector<16x2xf32>
    %c0_17 = arith.constant 0 : index
    %c0_18 = arith.constant 0 : index
    %23 = vector.load %arg8[%c0_17, %c0_18] : memref<16x1xf32, #tpu.memory_space<vmem>>, vector<16x1xf32>
    %c0_19 = arith.constant 0 : index
    %c0_20 = arith.constant 0 : index
    %24 = vector.load %arg9[%c0_19, %c0_20] : memref<16x1xf32, #tpu.memory_space<vmem>>, vector<16x1xf32>
    %25 = vector.broadcast %23 : vector<16x1xf32> to vector<16x2xf32>
    %26 = arith.maximumf %25, %22 : vector<16x2xf32>
    %27 = vector.broadcast %24 : vector<16x1xf32> to vector<16x2xf32>
    %28 = arith.minimumf %27, %26 : vector<16x2xf32>
    %c0_21 = arith.constant 0 : index
    %c0_22 = arith.constant 0 : index
    %29 = vector.load %arg10[%c0_21, %c0_22] : memref<16x2xf32, #tpu.memory_space<vmem>>, vector<16x2xf32>
    tpu.vector_store %arg10[%c0_21, %c0_22], %28 {strides = array<i32>} : memref<16x2xf32, #tpu.memory_space<vmem>>, vector<16x2xf32>,
    return
  }
  func.func @transform_0(%arg0: i32) -> (i32, i32) {
    %c0_i32 = arith.constant 0 : i32
    %c0_i32_0 = arith.constant 0 : i32
    return %c0_i32, %arg0 : i32, i32
  }
  func.func @transform_1(%arg0: i32) -> (i32, i32) {
    %c0_i32 = arith.constant 0 : i32
    %c0_i32_0 = arith.constant 0 : i32
    %c0_i32_1 = arith.constant 0 : i32
    return %c0_i32, %c0_i32_0 : i32, i32
  }
  func.func @transform_2(%arg0: i32) -> (i32, i32) {
    %c0_i32 = arith.constant 0 : i32
    %c0_i32_0 = arith.constant 0 : i32
    %c0_i32_1 = arith.constant 0 : i32
    return %c0_i32, %c0_i32_0 : i32, i32
  }
  func.func @transform_3(%arg0: i32) -> (i32, i32) {
    %c0_i32 = arith.constant 0 : i32
    %c0_i32_0 = arith.constant 0 : i32
    %c0_i32_1 = arith.constant 0 : i32
    return %c0_i32, %c0_i32_0 : i32, i32
  }
  func.func @transform_4(%arg0: i32) -> (i32, i32) {
    %c0_i32 = arith.constant 0 : i32
    %c0_i32_0 = arith.constant 0 : i32
    %c0_i32_1 = arith.constant 0 : i32
    return %c0_i32, %c0_i32_0 : i32, i32
  }
  func.func @transform_5(%arg0: i32) -> (i32, i32) {
    %c0_i32 = arith.constant 0 : i32
    %c0_i32_0 = arith.constant 0 : i32
    %c0_i32_1 = arith.constant 0 : i32
    return %c0_i32, %c0_i32_0 : i32, i32
  }
  func.func @transform_6(%arg0: i32) -> (i32, i32) {
    %c0_i32 = arith.constant 0 : i32
    %c0_i32_0 = arith.constant 0 : i32
    %c0_i32_1 = arith.constant 0 : i32
    return %c0_i32, %c0_i32_0 : i32, i32
  }
  func.func @transform_7(%arg0: i32) -> (i32, i32) {
    %c0_i32 = arith.constant 0 : i32
    %c0_i32_0 = arith.constant 0 : i32
    %c0_i32_1 = arith.constant 0 : i32
    return %c0_i32, %c0_i32_0 : i32, i32
  }
  func.func @transform_8(%arg0: i32) -> (i32, i32) {
    %c0_i32 = arith.constant 0 : i32
    %c0_i32_0 = arith.constant 0 : i32
    %c0_i32_1 = arith.constant 0 : i32
    return %c0_i32, %c0_i32_0 : i32, i32
  }
  func.func @transform_9(%arg0: i32) -> (i32, i32) {
    %c0_i32 = arith.constant 0 : i32
    %c0_i32_0 = arith.constant 0 : i32
    return %c0_i32, %arg0 : i32, i32
  }
}

</mosaic_0001>

<llo_original>
// kernel: _policy_forward_t.1
$region0: #{_policy_forward_t.1}
  #allocation0 [shape = 'u32[]', space=smem, size = 0x4, offset = 0x4, fixed_abs, tag = 'smem constant byte address 0x4 - core index']
  #allocation1 [shape = 'u32[144,128]{1,0:T(1,128)}', space=vmem, size = 0x12000, scoped, tag = 'internal scratch']
  %s0 = inlined_call_operand.vmem [shape: f32[16,2], index: 0, kind: input, shape index: {}]
  %s1 = inlined_call_operand.vmem [shape: bf16[32,16], index: 1, kind: input, shape index: {}]
  %s2 = inlined_call_operand.vmem [shape: f32[32,1], index: 2, kind: input, shape index: {}]
  %s3 = inlined_call_operand.vmem [shape: bf16[32,32], index: 3, kind: input, shape index: {}]
  %s4 = inlined_call_operand.vmem [shape: f32[32,1], index: 4, kind: input, shape index: {}]
  %s5 = inlined_call_operand.vmem [shape: bf16[16,32], index: 5, kind: input, shape index: {}]
  %s6 = inlined_call_operand.vmem [shape: f32[16,1], index: 6, kind: input, shape index: {}]
  %s7 = inlined_call_operand.vmem [shape: f32[16,1], index: 7, kind: input, shape index: {}]
  %s8 = inlined_call_operand.vmem [shape: f32[16,1], index: 8, kind: input, shape index: {}]
  %s9 = inlined_call_operand.vmem [shape: f32[16,2], index: 9, kind: output, shape index: {}]
  %s10 = sld [smem:[#allocation0]]
  $region46: #{_policy_forward_t.1} parent=0
    _
  %s12 = ssub.s32 1, %s10
  %s13 = scalar_select 0, %s12, %s10
  // Predicated region
  $region2: #{_policy_forward_t.1} parent=0 // pred_check
    _
  $region3: #{_policy_forward_t.1} parent=0 // pred_check_branch
    %15 = sbr.rel (0) target = $region5
  $region4: #{_policy_forward_t.1} parent=0 // pred_region
    _
  $region5: #{_policy_forward_t.1} parent=0 // pred_fallthru
    _
  // Predicated region
  $region6: #{_policy_forward_t.1} parent=0 // pred_check
    _
  $region7: #{_policy_forward_t.1} parent=0 // pred_check_branch
    %17 = sbr.rel (0) target = $region9
  $region8: #{_policy_forward_t.1} parent=0 // pred_region
    _
  $region9: #{_policy_forward_t.1} parent=0 // pred_fallthru
    _
  // Predicated region
  $region10: #{_policy_forward_t.1} parent=0 // pred_check
    _
  $region11: #{_policy_forward_t.1} parent=0 // pred_check_branch
    %19 = sbr.rel (0) target = $region13
  $region12: #{_policy_forward_t.1} parent=0 // pred_region
    _
  $region13: #{_policy_forward_t.1} parent=0 // pred_fallthru
    _
  // Predicated region
  $region14: #{_policy_forward_t.1} parent=0 // pred_check
    _
  $region15: #{_policy_forward_t.1} parent=0 // pred_check_branch
    %21 = sbr.rel (0) target = $region17
  $region16: #{_policy_forward_t.1} parent=0 // pred_region
    _
  $region17: #{_policy_forward_t.1} parent=0 // pred_fallthru
    _
  // Predicated region
  $region18: #{_policy_forward_t.1} parent=0 // pred_check
    _
  $region19: #{_policy_forward_t.1} parent=0 // pred_check_branch
    %23 = sbr.rel (0) target = $region21
  $region20: #{_policy_forward_t.1} parent=0 // pred_region
    _
  $region21: #{_policy_forward_t.1} parent=0 // pred_fallthru
    _
  // Predicated region
  $region22: #{_policy_forward_t.1} parent=0 // pred_check
    _
  $region23: #{_policy_forward_t.1} parent=0 // pred_check_branch
    %25 = sbr.rel (0) target = $region25
  $region24: #{_policy_forward_t.1} parent=0 // pred_region
    _
  $region25: #{_policy_forward_t.1} parent=0 // pred_fallthru
    _
  // Predicated region
  $region26: #{_policy_forward_t.1} parent=0 // pred_check
    _
  $region27: #{_policy_forward_t.1} parent=0 // pred_check_branch
    %27 = sbr.rel (0) target = $region29
  $region28: #{_policy_forward_t.1} parent=0 // pred_region
    _
  $region29: #{_policy_forward_t.1} parent=0 // pred_fallthru
    _
  // Predicated region
  $region30: #{_policy_forward_t.1} parent=0 // pred_check
    _
  $region31: #{_policy_forward_t.1} parent=0 // pred_check_branch
    %29 = sbr.rel (0) target = $region33
  $region32: #{_policy_forward_t.1} parent=0 // pred_region
    _
  $region33: #{_policy_forward_t.1} parent=0 // pred_fallthru
    _
  // Predicated region
  $region34: #{_policy_forward_t.1} parent=0 // pred_check
    _
  $region35: #{_policy_forward_t.1} parent=0 // pred_check_branch
    %31 = sbr.rel (0) target = $region37
  $region36: #{_policy_forward_t.1} parent=0 // pred_region
    _
  $region37: #{_policy_forward_t.1} parent=0 // pred_fallthru
    _
  %v33 = vld [vmem:[%s0] sm:$0xff]
  %v34 = vld [vmem:[%s0 + $0x8] sm:$0xff]
  %v35 = vpack.c.bf16 %v34, %v33
  %v36 = vld [vmem:[%s1] sm:$0xf]
  %v37 = vld [vmem:[%s1 + $0x4] sm:$0xf]
  %v38 = vld [vmem:[%s1 + $0x8] sm:$0xf]
  %v39 = vld [vmem:[%s1 + $0xc] sm:$0xf]
  %v40 = vld [vmem:[%s2] sm:$0xff]
  %v41 = vld [vmem:[%s2 + $0x8] sm:$0xff]
  %v42 = vld [vmem:[%s2 + $0x10] sm:$0xff]
  %v43 = vld [vmem:[%s2 + $0x18] sm:$0xff]
  %45 = vset.pattern.permute.xlu0 0
  %46 = vperm.xlu0 %45, %v40
  %v47 = vpop.permute.xlu0 %46
  %50 = vset.pattern.permute.xlu0 0
  %51 = vperm.xlu0 %50, %v41
  %v52 = vpop.permute.xlu0 %51
  %55 = vset.pattern.permute.xlu0 0
  %56 = vperm.xlu0 %55, %v42
  %v57 = vpop.permute.xlu0 %56
  %60 = vset.pattern.permute.xlu0 0
  %61 = vperm.xlu0 %60, %v43
  %v62 = vpop.permute.xlu0 %61
  %v68 = vunpack.c.l.b16 %v36
  %v69 = vunpack.c.l.b16 %v37
  %v70 = vunpack.c.l.b16 %v38
  %v71 = vunpack.c.l.b16 %v39
  %v72 = vpack.c.b16 %v69, %v68
  %v73 = vpack.c.b16 %v71, %v70
  %vm74 = vcmask 130048
  %v76 = vsel %vm74, %v72, 0
  %v79 = vsel %vm74, %v73, 0
  %81 = vmatprep.subr.bf16.mxu0 0
  %82 = vmatpush1.bf16.msra.mxu0 0
  %83 = vmatprep.subr.bf16.mxu0 0
  %84 = vmatpush1.bf16.msra.mxu0 0
  %85 = vmatprep.subr.bf16.mxu0 0
  %86 = vmatpush1.bf16.msra.mxu0 0
  %87 = vmatprep.subr.bf16.mxu0 0
  %88 = vmatpush1.bf16.msra.mxu0 0
  %89 = vmatprep.subr.bf16.mxu0 0
  %90 = vmatpush1.bf16.msra.mxu0 0
  %91 = vmatprep.subr.bf16.mxu0 0
  %92 = vmatpush1.bf16.msra.mxu0 0
  %93 = vmatprep.subr.bf16.mxu0 0
  %94 = vmatpush1.bf16.msra.mxu0 0
  %95 = vmatprep.subr.bf16.mxu0 0
  %96 = vmatpush1.bf16.msra.mxu0 %v35
  %97 = vmatprep.subr.bf16.mxu0 0
  %98 = vmatpush2.bf16.msra.mxu0 0
  %99 = vmatprep.subr.bf16.mxu0 0
  %100 = vmatpush2.bf16.msra.mxu0 0
  %101 = vmatprep.subr.bf16.mxu0 0
  %102 = vmatpush2.bf16.msra.mxu0 0
  %103 = vmatprep.subr.bf16.mxu0 0
  %104 = vmatpush2.bf16.msra.mxu0 0
  %105 = vmatprep.subr.bf16.mxu0 0
  %106 = vmatpush2.bf16.msra.mxu0 0
  %107 = vmatprep.subr.bf16.mxu0 0
  %108 = vmatpush2.bf16.msra.mxu0 0
  %109 = vmatprep.subr.bf16.mxu0 0
  %110 = vmatpush2.bf16.msra.mxu0 0
  %111 = vmatprep.subr.bf16.mxu0 0
  %112 = vmatpush2.bf16.msra.mxu0 0
  %113 = vmatprep.mubr.bf16.mxu0 0
  %114 = vmatmul.mubr.bf16.gmra.mxu0 %v76
  %v115 = vpop.f32.mrf.mxu0
  %v116 = vadd.f32 %v47, %v115
  %v117 = vpop.f32.mrf.mxu0
  %v118 = vpop.f32.mrf.mxu0
  %v119 = vadd.f32 %v52, %v118
  %v120 = vpop.f32.mrf.mxu0
  %121 = vmatprep.mubr.bf16.mxu0 0
  %122 = vmatmul.mubr.bf16.gmra.mxu0 %v79
  %v123 = vpop.f32.mrf.mxu0
  %v124 = vadd.f32 %v57, %v123
  %v125 = vpop.f32.mrf.mxu0
  %v126 = vpop.f32.mrf.mxu0
  %v127 = vadd.f32 %v62, %v126
  %v128 = vpop.f32.mrf.mxu0
  %129 = vdwg.mxu0
  %v130 = vmax.f32 %v116, 0.0
  %v131 = vmax.f32 %v119, 0.0
  %v132 = vmax.f32 %v124, 0.0
  %v133 = vmax.f32 %v127, 0.0
  %v134 = vpack.c.bf16 %v131, %v130
  %v135 = vpack.c.bf16 %v133, %v132
  %v136 = vld [vmem:[%s3] sm:$0xf]
  %v137 = vld [vmem:[%s3 + $0x4] sm:$0xf]
  %v138 = vld [vmem:[%s3 + $0x8] sm:$0xf]
  %v139 = vld [vmem:[%s3 + $0xc] sm:$0xf]
  %v140 = vld [vmem:[%s4] sm:$0xff]
  %v141 = vld [vmem:[%s4 + $0x8] sm:$0xff]
  %v142 = vld [vmem:[%s4 + $0x10] sm:$0xff]
  %v143 = vld [vmem:[%s4 + $0x18] sm:$0xff]
  %145 = vset.pattern.permute.xlu0 0
  %146 = vperm.xlu0 %145, %v140
  %v147 = vpop.permute.xlu0 %146
  %150 = vset.pattern.permute.xlu0 0
  %151 = vperm.xlu0 %150, %v141
  %v152 = vpop.permute.xlu0 %151
  %155 = vset.pattern.permute.xlu0 0
  %156 = vperm.xlu0 %155, %v142
  %v157 = vpop.permute.xlu0 %156
  %160 = vset.pattern.permute.xlu0 0
  %161 = vperm.xlu0 %160, %v143
  %v162 = vpop.permute.xlu0 %161
  %v168 = vunpack.c.l.b16 %v136
  %v169 = vunpack.c.l.b16 %v137
  %v170 = vunpack.c.l.b16 %v138
  %v171 = vunpack.c.l.b16 %v139
  %v172 = vpack.c.b16 %v169, %v168
  %v173 = vpack.c.b16 %v171, %v170
  %vm174 = vcmask 261120
  %v176 = vsel %vm174, %v172, 0
  %v179 = vsel %vm174, %v173, 0
  %181 = vmatprep.subr.bf16.mxu0 0
  %182 = vmatpush1.bf16.msra.mxu0 0
  %183 = vmatprep.subr.bf16.mxu0 0
  %184 = vmatpush1.bf16.msra.mxu0 0
  %185 = vmatprep.subr.bf16.mxu0 0
  %186 = vmatpush1.bf16.msra.mxu0 0
  %187 = vmatprep.subr.bf16.mxu0 0
  %188 = vmatpush1.bf16.msra.mxu0 0
  %189 = vmatprep.subr.bf16.mxu0 0
  %190 = vmatpush1.bf16.msra.mxu0 0
  %191 = vmatprep.subr.bf16.mxu0 0
  %192 = vmatpush1.bf16.msra.mxu0 0
  %193 = vmatprep.subr.bf16.mxu0 0
  %194 = vmatpush1.bf16.msra.mxu0 %v135
  %195 = vmatprep.subr.bf16.mxu0 0
  %196 = vmatpush1.bf16.msra.mxu0 %v134
  %197 = vmatprep.subr.bf16.mxu0 0
  %198 = vmatpush2.bf16.msra.mxu0 0
  %199 = vmatprep.subr.bf16.mxu0 0
  %200 = vmatpush2.bf16.msra.mxu0 0
  %201 = vmatprep.subr.bf16.mxu0 0
  %202 = vmatpush2.bf16.msra.mxu0 0
  %203 = vmatprep.subr.bf16.mxu0 0
  %204 = vmatpush2.bf16.msra.mxu0 0
  %205 = vmatprep.subr.bf16.mxu0 0
  %206 = vmatpush2.bf16.msra.mxu0 0
  %207 = vmatprep.subr.bf16.mxu0 0
  %208 = vmatpush2.bf16.msra.mxu0 0
  %209 = vmatprep.subr.bf16.mxu0 0
  %210 = vmatpush2.bf16.msra.mxu0 0
  %211 = vmatprep.subr.bf16.mxu0 0
  %212 = vmatpush2.bf16.msra.mxu0 0
  %213 = vmatprep.mubr.bf16.mxu0 0
  %214 = vmatmul.mubr.bf16.gmra.mxu0 %v176
  %v215 = vpop.f32.mrf.mxu0
  %v216 = vadd.f32 %v147, %v215
  %v217 = vpop.f32.mrf.mxu0
  %v218 = vpop.f32.mrf.mxu0
  %v219 = vadd.f32 %v152, %v218
  %v220 = vpop.f32.mrf.mxu0
  %221 = vmatprep.mubr.bf16.mxu0 0
  %222 = vmatmul.mubr.bf16.gmra.mxu0 %v179
  %v223 = vpop.f32.mrf.mxu0
  %v224 = vadd.f32 %v157, %v223
  %v225 = vpop.f32.mrf.mxu0
  %v226 = vpop.f32.mrf.mxu0
  %v227 = vadd.f32 %v162, %v226
  %v228 = vpop.f32.mrf.mxu0
  %229 = vdwg.mxu0
  %v230 = vmax.f32 %v216, 0.0
  %v231 = vmax.f32 %v219, 0.0
  %v232 = vmax.f32 %v224, 0.0
  %v233 = vmax.f32 %v227, 0.0
  %v234 = vpack.c.bf16 %v231, %v230
  %v235 = vpack.c.bf16 %v233, %v232
  %v236 = vld [vmem:[%s5] sm:$0xf]
  %v237 = vld [vmem:[%s5 + $0x4] sm:$0xf]
  %v238 = vld [vmem:[%s6] sm:$0xff]
  %v239 = vld [vmem:[%s6 + $0x8] sm:$0xff]
  %241 = vset.pattern.permute.xlu0 0
  %242 = vperm.xlu0 %241, %v238
  %v243 = vpop.permute.xlu0 %242
  %246 = vset.pattern.permute.xlu0 0
  %247 = vperm.xlu0 %246, %v239
  %v248 = vpop.permute.xlu0 %247
  %v252 = vunpack.c.l.b16 %v236
  %v253 = vunpack.c.l.b16 %v237
  %v254 = vpack.c.b16 %v253, %v252
  %v256 = vsel %vm174, %v254, 0
  %258 = vmatprep.subr.bf16.mxu0 0
  %259 = vmatpush1.bf16.msra.mxu0 0
  %260 = vmatprep.subr.bf16.mxu0 0
  %261 = vmatpush1.bf16.msra.mxu0 0
  %262 = vmatprep.subr.bf16.mxu0 0
  %263 = vmatpush1.bf16.msra.mxu0 0
  %264 = vmatprep.subr.bf16.mxu0 0
  %265 = vmatpush1.bf16.msra.mxu0 0
  %266 = vmatprep.subr.bf16.mxu0 0
  %267 = vmatpush1.bf16.msra.mxu0 0
  %268 = vmatprep.subr.bf16.mxu0 0
  %269 = vmatpush1.bf16.msra.mxu0 0
  %270 = vmatprep.subr.bf16.mxu0 0
  %271 = vmatpush1.bf16.msra.mxu0 %v235
  %272 = vmatprep.subr.bf16.mxu0 0
  %273 = vmatpush1.bf16.msra.mxu0 %v234
  %274 = vmatprep.subr.bf16.mxu0 0
  %275 = vmatpush2.bf16.msra.mxu0 0
  %276 = vmatprep.subr.bf16.mxu0 0
  %277 = vmatpush2.bf16.msra.mxu0 0
  %278 = vmatprep.subr.bf16.mxu0 0
  %279 = vmatpush2.bf16.msra.mxu0 0
  %280 = vmatprep.subr.bf16.mxu0 0
  %281 = vmatpush2.bf16.msra.mxu0 0
  %282 = vmatprep.subr.bf16.mxu0 0
  %283 = vmatpush2.bf16.msra.mxu0 0
  %284 = vmatprep.subr.bf16.mxu0 0
  %285 = vmatpush2.bf16.msra.mxu0 0
  %286 = vmatprep.subr.bf16.mxu0 0
  %287 = vmatpush2.bf16.msra.mxu0 0
  %288 = vmatprep.subr.bf16.mxu0 0
  %289 = vmatpush2.bf16.msra.mxu0 0
  %290 = vmatprep.mubr.bf16.mxu0 0
  %291 = vmatmul.mubr.bf16.gmra.mxu0 %v256
  %v292 = vpop.f32.mrf.mxu0
  %v293 = vadd.f32 %v243, %v292
  %v294 = vpop.f32.mrf.mxu0
  %v295 = vpop.f32.mrf.mxu0
  %v296 = vadd.f32 %v248, %v295
  %v297 = vpop.f32.mrf.mxu0
  %298 = vdwg.mxu0
  %v299 = vld [vmem:[%s7] sm:$0xff]
  %v300 = vld [vmem:[%s7 + $0x8] sm:$0xff]
  %v301 = vld [vmem:[%s8] sm:$0xff]
  %v302 = vld [vmem:[%s8 + $0x8] sm:$0xff]
  %304 = vset.pattern.permute.xlu0 0
  %305 = vperm.xlu0 %304, %v299
  %v306 = vpop.permute.xlu0 %305
  %309 = vset.pattern.permute.xlu0 0
  %310 = vperm.xlu0 %309, %v300
  %v311 = vpop.permute.xlu0 %310
  %v313 = vmax.f32 %v306, %v293
  %v314 = vmax.f32 %v311, %v296
  %316 = vset.pattern.permute.xlu0 0
  %317 = vperm.xlu0 %316, %v301
  %v318 = vpop.permute.xlu0 %317
  %321 = vset.pattern.permute.xlu0 0
  %322 = vperm.xlu0 %321, %v302
  %v323 = vpop.permute.xlu0 %322
  %v325 = vmin.f32 %v318, %v313
  %v326 = vmin.f32 %v323, %v314
  %vm327 = vcmask 15360
  %328 = vst.msk [vmem:[%s9] sm:$0xff] %vm327, %v325
  %329 = vst.msk [vmem:[%s9 + $0x8] sm:$0xff] %vm327, %v326
  // Predicated region
  $region38: #{_policy_forward_t.1} parent=0 // pred_check
    _
  $region39: #{_policy_forward_t.1} parent=0 // pred_check_branch
    %331 = sbr.rel (0) target = $region41
  $region40: #{_policy_forward_t.1} parent=0 // pred_region
    _
  $region41: #{_policy_forward_t.1} parent=0 // pred_fallthru
    _
  // Predicated region
  $region42: #{_policy_forward_t.1} parent=0 // pred_check
    _
  $region43: #{_policy_forward_t.1} parent=0 // pred_check_branch
    %333 = sbr.rel (0) target = $region45
  $region44: #{_policy_forward_t.1} parent=0 // pred_region
    _
  $region45: #{_policy_forward_t.1} parent=0 // pred_fallthru
    _

</llo_original>
